<compile_context>
chip_gen: v6e
topology: v6e:2x2x1
jax: 0.10.0
libtpu: 0.0.40
codegen_flags: <defaults>
</compile_context>

<pallas_src>
import jax
import jax.numpy as jnp
from jax.experimental import pallas as pl
from jax.experimental.pallas import tpu as pltpu

# (out_features, in_features) of the three Linear layers, in order.
_LAYER_DIMS = ((8, 5), (8, 8), (2, 8))
_IN_FEATURES = 5
_OUT_FEATURES = 2
_BIAS_COL = 8                     # bias lives in column 8 of the (3, 8, 9) slab

_LANE = 128                       # TPU lane width
_MAX_TILE_B = 131072              # per-step batch lanes; ~16 MiB double-buffered f32
_VMEM_LIMIT = 32 * 1024 * 1024    # raise v5e's 16 MiB scoped default; safe on all gens
_XLA_FALLBACK_B = 4096            # below this, plain XLA beats kernel + layout passes


def mlp_kernel(x_ref, wb_ref, out_ref):
    """x_ref:   (5, TB)   input features on sublanes, batch on the 128-lane axis
       wb_ref:  (3, 8, 9) packed params; [l, :dout, :din] = W_l, [l, :dout, 8] = b_l
       out_ref: (2, TB)   pre-softmax logits, batch on lanes (lane-dense store)
    """

    def dense(layer, h, relu):
        dout, din = _LAYER_DIMS[layer]
        wb = wb_ref[layer]                            # (8, 9) static-index load
        w = wb[:dout, :]                              # (dout, 9)
        # VPU outer-product accumulate: bias folded into the first FMA term and
        # two interleaved accumulators to break the serial add dependency chain.
        acc0 = w[:, _BIAS_COL:_BIAS_COL + 1] + w[:, 0:1] * h[0:1, :]
        acc1 = w[:, 1:2] * h[1:2, :]
        for k in range(2, din):                       # static python -> unrolled
            term = w[:, k:k + 1] * h[k:k + 1, :]
            if k % 2 == 0:
                acc0 = acc0 + term
            else:
                acc1 = acc1 + term
        out = acc0 + acc1                             # (dout, TB)
        return jnp.maximum(out, 0.0) if relu else out

    h = x_ref[...]                                    # (5, TB) f32
    h = dense(0, h, relu=True)                        # (8, TB)
    h = dense(1, h, relu=True)                        # (8, TB)
    out_ref[...] = dense(2, h, relu=False)            # (2, TB) lane-dense store


def _round_up(n, m):
    return -(-n // m) * m


def _pick_tile_b(batch):
    """Largest lane-dense batch tile that fits the scoped-VMEM budget on every
    TPU generation, while keeping >= 2 grid steps when the batch allows it so
    the "parallel" axis can be sharded across v7x's two TensorCores."""
    if batch <= _LANE:
        return _LANE
    half = _round_up(-(-batch // 2), _LANE)           # round_up(cdiv(batch, 2), 128)
    return max(_LANE, min(_MAX_TILE_B, half))


def reference_forward(x, params):
    """Pure-JAX reference matching the PyTorch module exactly (pre-softmax)."""
    wb = params["wb_slab"]
    w1, b1 = wb[0, :8, :5], wb[0, :8, _BIAS_COL]
    w2, b2 = wb[1, :8, :8], wb[1, :8, _BIAS_COL]
    w3, b3 = wb[2, :2, :8], wb[2, :2, _BIAS_COL]
    h = jnp.maximum(x @ w1.T + b1, 0.0)
    h = jnp.maximum(h @ w2.T + b2, 0.0)
    return h @ w3.T + b3


def model_2_forward(x, params, *, tile_b=None, force_kernel=False):
    """x: (B, 5) float32.  Returns (B, 2) pre-softmax logits (matches the
    PyTorch forward, which returns the last Linear output, not the Softmax)."""
    B = x.shape[0]

    if not force_kernel and B < _XLA_FALLBACK_B:
        # Small-batch bypass: wrapper layout passes + kernel launch exceed a
        # fused XLA matmul chain at these sizes.
        return reference_forward(x, params)

    wb_slab = params["wb_slab"]
    if tile_b is None:
        tile_b = _pick_tile_b(B)
    n_tiles = pl.cdiv(B, tile_b)
    Bp = n_tiles * tile_b

    # Feature-major, lane-dense layout: batch on the 128-lane axis.  One fused
    # pad of x.T (no zeros+scatter double pass, no 5->8 feature padding).
    xt = jnp.pad(x.T, ((0, 0), (0, Bp - B)))          # (5, Bp) f32

    out_t = pl.pallas_call(
        mlp_kernel,
        out_shape=jax.ShapeDtypeStruct((_OUT_FEATURES, Bp), jnp.float32),
        grid_spec=pltpu.PrefetchScalarGridSpec(
            num_scalar_prefetch=0,
            grid=(n_tiles,),
            in_specs=[
                pl.BlockSpec((_IN_FEATURES, tile_b), lambda i: (0, i)),
                pl.BlockSpec((3, 8, 9), lambda i: (0, 0, 0)),   # resident params
            ],
            out_specs=pl.BlockSpec((_OUT_FEATURES, tile_b), lambda i: (0, i)),
        ),
        compiler_params=pltpu.CompilerParams(
            dimension_semantics=("parallel",),        # v7x: shard batch over 2 TCs
            vmem_limit_bytes=_VMEM_LIMIT,
        ),
    )(xt, wb_slab)

    # TODO(synk): expose a feature-major (2, B) output option so large-batch
    # consumers can skip this final transpose pass.
    return out_t[:, :B].T


def init_params(key):
    """Deterministic init mimicking nn.Linear's U(-1/sqrt(fan_in), 1/sqrt(fan_in)).

    All six parameter tensors are packed into ONE zero-padded (3, 8, 9) slab:
    wb_slab[l, :dout, :din] = W_l (out_features x in_features),
    wb_slab[l, :dout,  8  ] = b_l.
    """
    fan = [(5, 8), (8, 8), (8, 2)]                    # (fan_in, fan_out)
    wb_slab = jnp.zeros((3, 8, 9), jnp.float32)
    for idx, (fan_in, fan_out) in enumerate(fan):
        key, kw, kb = jax.random.split(key, 3)
        bound = 1.0 / jnp.sqrt(float(fan_in))
        w = jax.random.uniform(kw, (fan_out, fan_in), jnp.float32,
                               minval=-bound, maxval=bound)
        b = jax.random.uniform(kb, (fan_out,), jnp.float32,
                               minval=-bound, maxval=bound)
        wb_slab = wb_slab.at[idx, :fan_out, :fan_in].set(w)
        wb_slab = wb_slab.at[idx, :fan_out, _BIAS_COL].set(b)
    return {"wb_slab": wb_slab}


if __name__ == "__main__":
    key = jax.random.PRNGKey(0)
    key, kx = jax.random.split(key)

    B = 200                       # small batch; exercises padding + 2-tile grid
    x = jax.random.normal(kx, (B, 5), jnp.float32)
    params = init_params(key)

    ref = reference_forward(x, params)

    # Pallas path (forced, since B is below the small-batch XLA bypass).
    out = jax.block_until_ready(model_2_forward(x, params, force_kernel=True))
    assert out.shape == (B, 2), out.shape
    assert jnp.allclose(out, ref, atol=1e-5, rtol=1e-5), (out, ref)

    # Default path at this batch size takes the small-batch XLA bypass.
    out_bypass = jax.block_until_ready(model_2_forward(x, params))
    assert jnp.allclose(out_bypass, ref, atol=1e-5, rtol=1e-5)

    print("KERNEL_OK")
</pallas_src>

<mosaic_0001>
module attributes {stable_mosaic.version = 11 : i64} {
  func.func @mlp_kernel(%arg0: i32, %arg1: memref<5x128xf32, #tpu.memory_space<vmem>>, %arg2: memref<3x8x9xf32, #tpu.memory_space<vmem>>, %arg3: memref<2x128xf32, #tpu.memory_space<vmem>>) attributes {dimension_semantics = [#tpu.dimension_semantics<parallel>], iteration_bounds = array<i64: 2>, scalar_prefetch = 0 : i64, scratch_operands = 0 : i64, tpu.core_type = #tpu.core_type<tc>, window_params = [{transform_indices = @transform_0, window_bounds = array<i64: 5, 128>}, {pipeline_mode = #tpu.pipeline_mode<synchronous>, transform_indices = @transform_1, window_bounds = array<i64: 3, 8, 9>}, {transform_indices = @transform_2, window_bounds = array<i64: 2, 128>}]} {
    %c0 = arith.constant 0 : index
    %c0_0 = arith.constant 0 : index
    %0 = vector.load %arg1[%c0, %c0_0] : memref<5x128xf32, #tpu.memory_space<vmem>>, vector<5x128xf32>
    %c0_1 = arith.constant 0 : index
    %c0_2 = arith.constant 0 : index
    %c0_3 = arith.constant 0 : index
    %1 = vector.load %arg2[%c0_1, %c0_2, %c0_3] : memref<3x8x9xf32, #tpu.memory_space<vmem>>, vector<1x8x9xf32>
    %2 = vector.shape_cast %1 : vector<1x8x9xf32> to vector<8x9xf32>
    %3 = vector.extract_strided_slice %2 {offsets = [0, 8], sizes = [8, 1], strides = [1, 1]} : vector<8x9xf32> to vector<8x1xf32>
    %4 = vector.extract_strided_slice %2 {offsets = [0, 0], sizes = [8, 1], strides = [1, 1]} : vector<8x9xf32> to vector<8x1xf32>
    %5 = vector.extract_strided_slice %0 {offsets = [0, 0], sizes = [1, 128], strides = [1, 1]} : vector<5x128xf32> to vector<1x128xf32>
    %6 = vector.broadcast %4 : vector<8x1xf32> to vector<8x128xf32>
    %7 = vector.broadcast %5 : vector<1x128xf32> to vector<8x128xf32>
    %8 = arith.mulf %6, %7 : vector<8x128xf32>
    %9 = vector.broadcast %3 : vector<8x1xf32> to vector<8x128xf32>
    %10 = arith.addf %9, %8 : vector<8x128xf32>
    %11 = vector.extract_strided_slice %2 {offsets = [0, 1], sizes = [8, 1], strides = [1, 1]} : vector<8x9xf32> to vector<8x1xf32>
    %12 = vector.extract_strided_slice %0 {offsets = [1, 0], sizes = [1, 128], strides = [1, 1]} : vector<5x128xf32> to vector<1x128xf32>
    %13 = vector.broadcast %11 : vector<8x1xf32> to vector<8x128xf32>
    %14 = vector.broadcast %12 : vector<1x128xf32> to vector<8x128xf32>
    %15 = arith.mulf %13, %14 : vector<8x128xf32>
    %16 = vector.extract_strided_slice %2 {offsets = [0, 2], sizes = [8, 1], strides = [1, 1]} : vector<8x9xf32> to vector<8x1xf32>
    %17 = vector.extract_strided_slice %0 {offsets = [2, 0], sizes = [1, 128], strides = [1, 1]} : vector<5x128xf32> to vector<1x128xf32>
    %18 = vector.broadcast %16 : vector<8x1xf32> to vector<8x128xf32>
    %19 = vector.broadcast %17 : vector<1x128xf32> to vector<8x128xf32>
    %20 = arith.mulf %18, %19 : vector<8x128xf32>
    %21 = arith.addf %10, %20 : vector<8x128xf32>
    %22 = vector.extract_strided_slice %2 {offsets = [0, 3], sizes = [8, 1], strides = [1, 1]} : vector<8x9xf32> to vector<8x1xf32>
    %23 = vector.extract_strided_slice %0 {offsets = [3, 0], sizes = [1, 128], strides = [1, 1]} : vector<5x128xf32> to vector<1x128xf32>
    %24 = vector.broadcast %22 : vector<8x1xf32> to vector<8x128xf32>
    %25 = vector.broadcast %23 : vector<1x128xf32> to vector<8x128xf32>
    %26 = arith.mulf %24, %25 : vector<8x128xf32>
    %27 = arith.addf %15, %26 : vector<8x128xf32>
    %28 = vector.extract_strided_slice %2 {offsets = [0, 4], sizes = [8, 1], strides = [1, 1]} : vector<8x9xf32> to vector<8x1xf32>
    %29 = vector.extract_strided_slice %0 {offsets = [4, 0], sizes = [1, 128], strides = [1, 1]} : vector<5x128xf32> to vector<1x128xf32>
    %30 = vector.broadcast %28 : vector<8x1xf32> to vector<8x128xf32>
    %31 = vector.broadcast %29 : vector<1x128xf32> to vector<8x128xf32>
    %32 = arith.mulf %30, %31 : vector<8x128xf32>
    %33 = arith.addf %21, %32 : vector<8x128xf32>
    %34 = arith.addf %33, %27 : vector<8x128xf32>
    %cst = arith.constant 0.000000e+00 : f32
    %35 = vector.broadcast %cst : f32 to vector<8x128xf32>
    %36 = arith.maximumf %34, %35 : vector<8x128xf32>
    %c1 = arith.constant 1 : index
    %c0_4 = arith.constant 0 : index
    %c0_5 = arith.constant 0 : index
    %37 = vector.load %arg2[%c1, %c0_4, %c0_5] : memref<3x8x9xf32, #tpu.memory_space<vmem>>, vector<1x8x9xf32>
    %38 = vector.shape_cast %37 : vector<1x8x9xf32> to vector<8x9xf32>
    %39 = vector.extract_strided_slice %38 {offsets = [0, 8], sizes = [8, 1], strides = [1, 1]} : vector<8x9xf32> to vector<8x1xf32>
    %40 = vector.extract_strided_slice %38 {offsets = [0, 0], sizes = [8, 1], strides = [1, 1]} : vector<8x9xf32> to vector<8x1xf32>
    %41 = vector.extract_strided_slice %36 {offsets = [0, 0], sizes = [1, 128], strides = [1, 1]} : vector<8x128xf32> to vector<1x128xf32>
    %42 = vector.broadcast %40 : vector<8x1xf32> to vector<8x128xf32>
    %43 = vector.broadcast %41 : vector<1x128xf32> to vector<8x128xf32>
    %44 = arith.mulf %42, %43 : vector<8x128xf32>
    %45 = vector.broadcast %39 : vector<8x1xf32> to vector<8x128xf32>
    %46 = arith.addf %45, %44 : vector<8x128xf32>
    %47 = vector.extract_strided_slice %38 {offsets = [0, 1], sizes = [8, 1], strides = [1, 1]} : vector<8x9xf32> to vector<8x1xf32>
    %48 = vector.extract_strided_slice %36 {offsets = [1, 0], sizes = [1, 128], strides = [1, 1]} : vector<8x128xf32> to vector<1x128xf32>
    %49 = vector.broadcast %47 : vector<8x1xf32> to vector<8x128xf32>
    %50 = vector.broadcast %48 : vector<1x128xf32> to vector<8x128xf32>
    %51 = arith.mulf %49, %50 : vector<8x128xf32>
    %52 = vector.extract_strided_slice %38 {offsets = [0, 2], sizes = [8, 1], strides = [1, 1]} : vector<8x9xf32> to vector<8x1xf32>
    %53 = vector.extract_strided_slice %36 {offsets = [2, 0], sizes = [1, 128], strides = [1, 1]} : vector<8x128xf32> to vector<1x128xf32>
    %54 = vector.broadcast %52 : vector<8x1xf32> to vector<8x128xf32>
    %55 = vector.broadcast %53 : vector<1x128xf32> to vector<8x128xf32>
    %56 = arith.mulf %54, %55 : vector<8x128xf32>
    %57 = arith.addf %46, %56 : vector<8x128xf32>
    %58 = vector.extract_strided_slice %38 {offsets = [0, 3], sizes = [8, 1], strides = [1, 1]} : vector<8x9xf32> to vector<8x1xf32>
    %59 = vector.extract_strided_slice %36 {offsets = [3, 0], sizes = [1, 128], strides = [1, 1]} : vector<8x128xf32> to vector<1x128xf32>
    %60 = vector.broadcast %58 : vector<8x1xf32> to vector<8x128xf32>
    %61 = vector.broadcast %59 : vector<1x128xf32> to vector<8x128xf32>
    %62 = arith.mulf %60, %61 : vector<8x128xf32>
    %63 = arith.addf %51, %62 : vector<8x128xf32>
    %64 = vector.extract_strided_slice %38 {offsets = [0, 4], sizes = [8, 1], strides = [1, 1]} : vector<8x9xf32> to vector<8x1xf32>
    %65 = vector.extract_strided_slice %36 {offsets = [4, 0], sizes = [1, 128], strides = [1, 1]} : vector<8x128xf32> to vector<1x128xf32>
    %66 = vector.broadcast %64 : vector<8x1xf32> to vector<8x128xf32>
    %67 = vector.broadcast %65 : vector<1x128xf32> to vector<8x128xf32>
    %68 = arith.mulf %66, %67 : vector<8x128xf32>
    %69 = arith.addf %57, %68 : vector<8x128xf32>
    %70 = vector.extract_strided_slice %38 {offsets = [0, 5], sizes = [8, 1], strides = [1, 1]} : vector<8x9xf32> to vector<8x1xf32>
    %71 = vector.extract_strided_slice %36 {offsets = [5, 0], sizes = [1, 128], strides = [1, 1]} : vector<8x128xf32> to vector<1x128xf32>
    %72 = vector.broadcast %70 : vector<8x1xf32> to vector<8x128xf32>
    %73 = vector.broadcast %71 : vector<1x128xf32> to vector<8x128xf32>
    %74 = arith.mulf %72, %73 : vector<8x128xf32>
    %75 = arith.addf %63, %74 : vector<8x128xf32>
    %76 = vector.extract_strided_slice %38 {offsets = [0, 6], sizes = [8, 1], strides = [1, 1]} : vector<8x9xf32> to vector<8x1xf32>
    %77 = vector.extract_strided_slice %36 {offsets = [6, 0], sizes = [1, 128], strides = [1, 1]} : vector<8x128xf32> to vector<1x128xf32>
    %78 = vector.broadcast %76 : vector<8x1xf32> to vector<8x128xf32>
    %79 = vector.broadcast %77 : vector<1x128xf32> to vector<8x128xf32>
    %80 = arith.mulf %78, %79 : vector<8x128xf32>
    %81 = arith.addf %69, %80 : vector<8x128xf32>
    %82 = vector.extract_strided_slice %38 {offsets = [0, 7], sizes = [8, 1], strides = [1, 1]} : vector<8x9xf32> to vector<8x1xf32>
    %83 = vector.extract_strided_slice %36 {offsets = [7, 0], sizes = [1, 128], strides = [1, 1]} : vector<8x128xf32> to vector<1x128xf32>
    %84 = vector.broadcast %82 : vector<8x1xf32> to vector<8x128xf32>
    %85 = vector.broadcast %83 : vector<1x128xf32> to vector<8x128xf32>
    %86 = arith.mulf %84, %85 : vector<8x128xf32>
    %87 = arith.addf %75, %86 : vector<8x128xf32>
    %88 = arith.addf %81, %87 : vector<8x128xf32>
    %cst_6 = arith.constant 0.000000e+00 : f32
    %89 = vector.broadcast %cst_6 : f32 to vector<8x128xf32>
    %90 = arith.maximumf %88, %89 : vector<8x128xf32>
    %c2 = arith.constant 2 : index
    %c0_7 = arith.constant 0 : index
    %c0_8 = arith.constant 0 : index
    %91 = vector.load %arg2[%c2, %c0_7, %c0_8] : memref<3x8x9xf32, #tpu.memory_space<vmem>>, vector<1x8x9xf32>
    %92 = vector.shape_cast %91 : vector<1x8x9xf32> to vector<8x9xf32>
    %93 = vector.extract_strided_slice %92 {offsets = [0, 0], sizes = [2, 9], strides = [1, 1]} : vector<8x9xf32> to vector<2x9xf32>
    %94 = vector.extract_strided_slice %93 {offsets = [0, 8], sizes = [2, 1], strides = [1, 1]} : vector<2x9xf32> to vector<2x1xf32>
    %95 = vector.extract_strided_slice %93 {offsets = [0, 0], sizes = [2, 1], strides = [1, 1]} : vector<2x9xf32> to vector<2x1xf32>
    %96 = vector.extract_strided_slice %90 {offsets = [0, 0], sizes = [1, 128], strides = [1, 1]} : vector<8x128xf32> to vector<1x128xf32>
    %97 = vector.broadcast %95 : vector<2x1xf32> to vector<2x128xf32>
    %98 = vector.broadcast %96 : vector<1x128xf32> to vector<2x128xf32>
    %99 = arith.mulf %97, %98 : vector<2x128xf32>
    %100 = vector.broadcast %94 : vector<2x1xf32> to vector<2x128xf32>
    %101 = arith.addf %100, %99 : vector<2x128xf32>
    %102 = vector.extract_strided_slice %93 {offsets = [0, 1], sizes = [2, 1], strides = [1, 1]} : vector<2x9xf32> to vector<2x1xf32>
    %103 = vector.extract_strided_slice %90 {offsets = [1, 0], sizes = [1, 128], strides = [1, 1]} : vector<8x128xf32> to vector<1x128xf32>
    %104 = vector.broadcast %102 : vector<2x1xf32> to vector<2x128xf32>
    %105 = vector.broadcast %103 : vector<1x128xf32> to vector<2x128xf32>
    %106 = arith.mulf %104, %105 : vector<2x128xf32>
    %107 = vector.extract_strided_slice %93 {offsets = [0, 2], sizes = [2, 1], strides = [1, 1]} : vector<2x9xf32> to vector<2x1xf32>
    %108 = vector.extract_strided_slice %90 {offsets = [2, 0], sizes = [1, 128], strides = [1, 1]} : vector<8x128xf32> to vector<1x128xf32>
    %109 = vector.broadcast %107 : vector<2x1xf32> to vector<2x128xf32>
    %110 = vector.broadcast %108 : vector<1x128xf32> to vector<2x128xf32>
    %111 = arith.mulf %109, %110 : vector<2x128xf32>
    %112 = arith.addf %101, %111 : vector<2x128xf32>
    %113 = vector.extract_strided_slice %93 {offsets = [0, 3], sizes = [2, 1], strides = [1, 1]} : vector<2x9xf32> to vector<2x1xf32>
    %114 = vector.extract_strided_slice %90 {offsets = [3, 0], sizes = [1, 128], strides = [1, 1]} : vector<8x128xf32> to vector<1x128xf32>
    %115 = vector.broadcast %113 : vector<2x1xf32> to vector<2x128xf32>
    %116 = vector.broadcast %114 : vector<1x128xf32> to vector<2x128xf32>
    %117 = arith.mulf %115, %116 : vector<2x128xf32>
    %118 = arith.addf %106, %117 : vector<2x128xf32>
    %119 = vector.extract_strided_slice %93 {offsets = [0, 4], sizes = [2, 1], strides = [1, 1]} : vector<2x9xf32> to vector<2x1xf32>
    %120 = vector.extract_strided_slice %90 {offsets = [4, 0], sizes = [1, 128], strides = [1, 1]} : vector<8x128xf32> to vector<1x128xf32>
    %121 = vector.broadcast %119 : vector<2x1xf32> to vector<2x128xf32>
    %122 = vector.broadcast %120 : vector<1x128xf32> to vector<2x128xf32>
    %123 = arith.mulf %121, %122 : vector<2x128xf32>
    %124 = arith.addf %112, %123 : vector<2x128xf32>
    %125 = vector.extract_strided_slice %93 {offsets = [0, 5], sizes = [2, 1], strides = [1, 1]} : vector<2x9xf32> to vector<2x1xf32>
    %126 = vector.extract_strided_slice %90 {offsets = [5, 0], sizes = [1, 128], strides = [1, 1]} : vector<8x128xf32> to vector<1x128xf32>
    %127 = vector.broadcast %125 : vector<2x1xf32> to vector<2x128xf32>
    %128 = vector.broadcast %126 : vector<1x128xf32> to vector<2x128xf32>
    %129 = arith.mulf %127, %128 : vector<2x128xf32>
    %130 = arith.addf %118, %129 : vector<2x128xf32>
    %131 = vector.extract_strided_slice %93 {offsets = [0, 6], sizes = [2, 1], strides = [1, 1]} : vector<2x9xf32> to vector<2x1xf32>
    %132 = vector.extract_strided_slice %90 {offsets = [6, 0], sizes = [1, 128], strides = [1, 1]} : vector<8x128xf32> to vector<1x128xf32>
    %133 = vector.broadcast %131 : vector<2x1xf32> to vector<2x128xf32>
    %134 = vector.broadcast %132 : vector<1x128xf32> to vector<2x128xf32>
    %135 = arith.mulf %133, %134 : vector<2x128xf32>
    %136 = arith.addf %124, %135 : vector<2x128xf32>
    %137 = vector.extract_strided_slice %93 {offsets = [0, 7], sizes = [2, 1], strides = [1, 1]} : vector<2x9xf32> to vector<2x1xf32>
    %138 = vector.extract_strided_slice %90 {offsets = [7, 0], sizes = [1, 128], strides = [1, 1]} : vector<8x128xf32> to vector<1x128xf32>
    %139 = vector.broadcast %137 : vector<2x1xf32> to vector<2x128xf32>
    %140 = vector.broadcast %138 : vector<1x128xf32> to vector<2x128xf32>
    %141 = arith.mulf %139, %140 : vector<2x128xf32>
    %142 = arith.addf %130, %141 : vector<2x128xf32>
    %143 = arith.addf %136, %142 : vector<2x128xf32>
    %c0_9 = arith.constant 0 : index
    %c0_10 = arith.constant 0 : index
    %144 = vector.load %arg3[%c0_9, %c0_10] : memref<2x128xf32, #tpu.memory_space<vmem>>, vector<2x128xf32>
    tpu.vector_store %arg3[%c0_9, %c0_10], %143 {strides = array<i32>} : memref<2x128xf32, #tpu.memory_space<vmem>>, vector<2x128xf32>,
    return
  }
  func.func @transform_0(%arg0: i32) -> (i32, i32) {
    %c0_i32 = arith.constant 0 : i32
    %c0_i32_0 = arith.constant 0 : i32
    return %c0_i32, %arg0 : i32, i32
  }
  func.func @transform_1(%arg0: i32) -> (i32, i32, i32) {
    %c0_i32 = arith.constant 0 : i32
    %c0_i32_0 = arith.constant 0 : i32
    %c0_i32_1 = arith.constant 0 : i32
    %c0_i32_2 = arith.constant 0 : i32
    return %c0_i32, %c0_i32_0, %c0_i32_1 : i32, i32, i32
  }
  func.func @transform_2(%arg0: i32) -> (i32, i32) {
    %c0_i32 = arith.constant 0 : i32
    %c0_i32_0 = arith.constant 0 : i32
    return %c0_i32, %arg0 : i32, i32
  }
}

</mosaic_0001>

<llo_original>
// kernel: tpu_custom_call.1
$region0: #{tpu_custom_call.1}
  #allocation0 [shape = 'u32[]', space=smem, size = 0x4, offset = 0x4, fixed_abs, tag = 'smem constant byte address 0x4 - core index']
  #allocation1 [shape = 'u32[144,128]{1,0:T(1,128)}', space=vmem, size = 0x12000, scoped, tag = 'internal scratch']
  %s0 = inlined_call_operand.hbm [shape: f32[5,256], index: 0, kind: input, shape index: {}]
  %s1 = inlined_call_operand.hbm [shape: f32[3,8,9], index: 1, kind: input, shape index: {}]
  %s2 = inlined_call_operand.hbm [shape: f32[2,256], index: 2, kind: output, shape index: {}]
  %s3 = sld [smem:[#allocation0]]
  $region49: #{tpu_custom_call.1} parent=0
    _
  %s5 = ssub.s32 1, %s3
  %s6 = scalar_select 0, %s5, %s3
  $region1: #{tpu_custom_call.1} parent=0
    #allocation2 [shape = 'u8[8192]{0}', space=vmem, size = 0x2000, scoped, tag = 'input window, operand 0']
    #allocation3 [shape = 's32[2]{0}', space=sflag, size = 0x8, scoped, tag = 'scoped memory for tpu_custom_call.1']
    #allocation4 [shape = 's32[2]{0}', space=sflag, size = 0x8, scoped, tag = 'scoped memory for tpu_custom_call.1']
    #allocation5 [shape = 'u8[12288]{0}', space=vmem, size = 0x3000, scoped, tag = 'input window, operand 1, single buffered']
    #allocation6 [shape = 's32[1]{0}', space=sflag, size = 0x4, scoped, tag = 'scoped memory for tpu_custom_call.1']
    #allocation7 [shape = 'u8[2048]{0}', space=vmem, size = 0x800, scoped, tag = 'output window, operand 0']
    %7 = vsyncpa [#allocation3], 0
    %s8 = scalar_lea.sflag [#allocation3], 1
    %9 = vsyncpa %s8, 0
    %10 = vsyncpa [#allocation6], 0
    %11 = vsyncpa [#allocation4], 0
    %s12 = scalar_lea.sflag [#allocation4], 1
    %13 = vsyncpa %s12, 0
    loop: start=0, step=1, limit=4
    $region2: #{tpu_custom_call.1} parent=1 // loop_pre_header
      _
    $region3: #{tpu_custom_call.1} parent=1 // loop_header
      %s15 = sphi 0, %s19
      %p16 = scmp.ge.s32.totalorder %s15, 4
      %s25 = sphi 0, %s27
      %s28 = sphi 0, %s25
      %s29 = sphi 0, %s28
      %s45 = sphi 0, %s29
      %s49 = sphi 0, %s49
      %s51 = sphi 0, %s49
      %s52 = sphi 0, %s51
      %s66 = sphi 0, %s52
      %s72 = sphi 0, %s74
      %s75 = sphi 0, %s72
      %s76 = sphi 0, %s75
      %s92 = sphi 0, %s76
    $region4: #{tpu_custom_call.1} parent=1 // loop_header_branch
      %18 = sbr.rel (%p16) target = $region8
    $region5: #{tpu_custom_call.1} parent=1 // loop_body
      %s20 = ssub.s32 %s15, 1
      %s21 = ssub.s32 %s15, 2
      %s22 = sadd.s32 %s15, 1
      %s23 = ssub.s32 %s15, %s22
      %p24 = scmp.eq.s32.totalorder %s23, 0
      %s26 = sadd.s32 %s25, 1
      %s27 = scalar_select %p24, %s25, %s26
      %p30 = pneg %p24
      %p31 = scmp.eq.s32.totalorder %s15, 1
      %p32 = por %p30, %p31
      %p33 = scmp.ne.s32.totalorder %s25, %s28
      %p34 = scmp.eq.s32.totalorder %s15, 0
      %p35 = por %p33, %p34
      %p36 = scmp.ne.s32.totalorder %s25, %s28
      %p37 = scmp.eq.s32.totalorder %s20, 1
      %p38 = por %p36, %p37
      %p39 = scmp.ne.s32.totalorder %s28, %s29
      %p40 = scmp.eq.s32.totalorder %s20, 0
      %p41 = por %p39, %p40
      %p42 = scmp.ne.s32.totalorder %s28, %s29
      %p43 = scmp.eq.s32.totalorder %s21, 1
      %p44 = por %p42, %p43
      %p46 = scmp.ne.s32.totalorder %s29, %s45
      %p47 = scmp.eq.s32.totalorder %s21, 0
      %p48 = por %p46, %p47
      %s50 = sadd.s32 %s49, 1
      %p53 = scmp.eq.s32.totalorder %s15, 1
      %p54 = scmp.ne.s32.totalorder %s49, %s51
      %p55 = scmp.eq.s32.totalorder %s15, 0
      %p56 = por %p54, %p55
      %p57 = scmp.ne.s32.totalorder %s49, %s51
      %p58 = scmp.eq.s32.totalorder %s20, 1
      %p59 = por %p57, %p58
      %p60 = scmp.ne.s32.totalorder %s51, %s52
      %p61 = scmp.eq.s32.totalorder %s20, 0
      %p62 = por %p60, %p61
      %p63 = scmp.ne.s32.totalorder %s51, %s52
      %p64 = scmp.eq.s32.totalorder %s21, 1
      %p65 = por %p63, %p64
      %p67 = scmp.ne.s32.totalorder %s52, %s66
      %p68 = scmp.eq.s32.totalorder %s21, 0
      %p69 = por %p67, %p68
      %s70 = ssub.s32 %s15, %s22
      %p71 = scmp.eq.s32.totalorder %s70, 0
      %s73 = sadd.s32 %s72, 1
      %s74 = scalar_select %p71, %s72, %s73
      %p77 = pneg %p71
      %p78 = scmp.eq.s32.totalorder %s15, 1
      %p79 = por %p77, %p78
      %p80 = scmp.ne.s32.totalorder %s72, %s75
      %p81 = scmp.eq.s32.totalorder %s15, 0
      %p82 = por %p80, %p81
      %p83 = scmp.ne.s32.totalorder %s72, %s75
      %p84 = scmp.eq.s32.totalorder %s20, 1
      %p85 = por %p83, %p84
      %p86 = scmp.ne.s32.totalorder %s75, %s76
      %p87 = scmp.eq.s32.totalorder %s20, 0
      %p88 = por %p86, %p87
      %p89 = scmp.ne.s32.totalorder %s75, %s76
      %p90 = scmp.eq.s32.totalorder %s21, 1
      %p91 = por %p89, %p90
      %p93 = scmp.ne.s32.totalorder %s76, %s92
      %p94 = scmp.eq.s32.totalorder %s21, 0
      %p95 = por %p93, %p94
      %p96 = scmp.le.s32.totalorder 1, %s15
      %p97 = scmp.lt.s32.totalorder %s15, 3
      %p98 = pnand %p96, %p97
      %p99 = pneg %p98
      // Predicated region
      $region9: #{tpu_custom_call.1} parent=5 // pred_check
        _
      $region10: #{tpu_custom_call.1} parent=5 // pred_check_branch
        %101 = sbr.rel (%p98) target = $region12
      $region11: #{tpu_custom_call.1} parent=5 // pred_region
        %s102 = ssub.s32 %s15, 1
        // Predicated region
        $region13: #{tpu_custom_call.1} parent=11 // pred_check
          %p103 = pneg %p62
        $region14: #{tpu_custom_call.1} parent=11 // pred_check_branch
          %105 = sbr.rel (%p103) target = $region16
        $region15: #{tpu_custom_call.1} parent=11 // pred_region
          %s107 = ssub.s32 384, 384
          %108 = vsyncadd [#allocation6], %s107
          %s109 = sshll.u32 [#allocation5], 4
          %s110 = int_to_ptr.vmem [resolvable:$true] %s109
          %115 = dma.hbm_to_vmem [thread:$0]  %s1, 384, %s110, [#allocation6], 128, 128, 8
        $region16: #{tpu_custom_call.1} parent=11 // pred_fallthru
          _
      $region12: #{tpu_custom_call.1} parent=5 // pred_fallthru
        _
      %p116 = scmp.lt.s32.totalorder %s15, 2
      // Predicated region
      $region17: #{tpu_custom_call.1} parent=5 // pred_check
        %p117 = pneg %p116
      $region18: #{tpu_custom_call.1} parent=5 // pred_check_branch
        %119 = sbr.rel (%p117) target = $region20
      $region19: #{tpu_custom_call.1} parent=5 // pred_region
        // Predicated region
        $region21: #{tpu_custom_call.1} parent=19 // pred_check
          %p120 = pneg %p35
        $region22: #{tpu_custom_call.1} parent=19 // pred_check_branch
          %122 = sbr.rel (%p120) target = $region24
        $region23: #{tpu_custom_call.1} parent=19 // pred_region
          %s123 = sand.u32 %s25, 1
          %s124 = scalar_lea.sflag [#allocation3], %s123
          %s125 = sand.u32 %s25, 1
          %s126 = smul.addr %s125, 8
          %s127 = scalar_lea.vmem [#allocation2], %s126
          %s129 = ssub.s32 128, 128
          %130 = vsyncadd %s124, %s129
          %s131 = smul.addr %s15, 128
          %s132 = scalar_lea.hbm %s0, %s131
          %s134 = sshll.u32 %s127, 4
          %s135 = int_to_ptr.vmem [resolvable:$true] %s134
          %137 = dma.hbm_to_vmem [thread:$0]  %s132, 128, %s135, %s124
        $region24: #{tpu_custom_call.1} parent=19 // pred_fallthru
          _
      $region20: #{tpu_custom_call.1} parent=5 // pred_fallthru
        _
      %p138 = scmp.le.s32.totalorder 1, %s15
      %p139 = scmp.lt.s32.totalorder %s15, 3
      %p140 = pnand %p138, %p139
      %p141 = pneg %p140
      // Predicated region
      $region25: #{tpu_custom_call.1} parent=5 // pred_check
        _
      $region26: #{tpu_custom_call.1} parent=5 // pred_check_branch
        %143 = sbr.rel (%p140) target = $region28
      $region27: #{tpu_custom_call.1} parent=5 // pred_region
        %s144 = ssub.s32 %s15, 1
        %s145 = sand.u32 %s28, 1
        %s146 = scalar_lea.sflag [#allocation3], %s145
        %s147 = sand.u32 %s28, 1
        %s148 = smul.addr %s147, 8
        %s149 = scalar_lea.vmem [#allocation2], %s148
        // Predicated region
        $region29: #{tpu_custom_call.1} parent=27 // pred_check
          %p150 = pneg %p41
        $region30: #{tpu_custom_call.1} parent=27 // pred_check_branch
          %152 = sbr.rel (%p150) target = $region32
        $region31: #{tpu_custom_call.1} parent=27 // pred_region
          %153 = dma.done %s146, 128
        $region32: #{tpu_custom_call.1} parent=27 // pred_fallthru
          _
        // Predicated region
        $region33: #{tpu_custom_call.1} parent=27 // pred_check
          %p154 = pneg %p62
        $region34: #{tpu_custom_call.1} parent=27 // pred_check_branch
          %156 = sbr.rel (%p154) target = $region36
        $region35: #{tpu_custom_call.1} parent=27 // pred_region
          %157 = dma.done [#allocation6], 384
        $region36: #{tpu_custom_call.1} parent=27 // pred_fallthru
          _
        %s158 = sand.u32 %s28, 1
        %s159 = scalar_lea.sflag [#allocation3], %s158
        %s160 = sand.u32 %s28, 1
        %s161 = smul.addr %s160, 8
        %s162 = scalar_lea.vmem [#allocation2], %s161
        %p163 = pneg %p41
        %p164 = pneg %p38
        %p165 = pneg %p62
        %p166 = pneg %p59
        %p167 = pneg %p88
        %p168 = pneg %p85
        %s169 = sand.u32 %s75, 1
        %s170 = scalar_lea.sflag [#allocation4], %s169
        %s171 = sand.u32 %s75, 1
        %s172 = smul.addr %s171, 2
        %s173 = scalar_lea.vmem [#allocation7], %s172
        %v174 = vld [vmem:[%s149] sm:$0x1f]
        %v175 = vld [vmem:[#allocation5] sm:$0xff]
        %177 = vset.pattern.permute.xlu0 0
        %178 = vperm.xlu0 %177, %v175
        %v179 = vpop.permute.xlu0 %178
        %v181 = vlaneseq
        %v182 = vshrl.u32 %v181, 7
        %v183 = vsub.s32 0, %v182
        %v184 = vrot.slane %v174, %v183
        %v185 = vmul.f32 %v179, %v184
        %186 = vset.pattern.permute.xlu0 8
        %187 = vperm.xlu0 %186, %v175
        %v188 = vpop.permute.xlu0 %187
        %v190 = vadd.f32 %v188, %v185
        %191 = vset.pattern.permute.xlu0 1
        %192 = vperm.xlu0 %191, %v175
        %v193 = vpop.permute.xlu0 %192
        %v195 = vlaneseq
        %v196 = vshrl.u32 %v195, 7
        %v197 = vsub.s32 1, %v196
        %v198 = vrot.slane %v174, %v197
        %v199 = vmul.f32 %v193, %v198
        %200 = vset.pattern.permute.xlu0 2
        %201 = vperm.xlu0 %200, %v175
        %v202 = vpop.permute.xlu0 %201
        %v204 = vlaneseq
        %v205 = vshrl.u32 %v204, 7
        %v206 = vsub.s32 2, %v205
        %v207 = vrot.slane %v174, %v206
        %v208 = vmul.f32 %v202, %v207
        %v209 = vadd.f32 %v190, %v208
        %210 = vset.pattern.permute.xlu0 3
        %211 = vperm.xlu0 %210, %v175
        %v212 = vpop.permute.xlu0 %211
        %v214 = vlaneseq
        %v215 = vshrl.u32 %v214, 7
        %v216 = vsub.s32 3, %v215
        %v217 = vrot.slane %v174, %v216
        %v218 = vmul.f32 %v212, %v217
        %v219 = vadd.f32 %v199, %v218
        %220 = vset.pattern.permute.xlu0 4
        %221 = vperm.xlu0 %220, %v175
        %v222 = vpop.permute.xlu0 %221
        %v224 = vlaneseq
        %v225 = vshrl.u32 %v224, 7
        %v226 = vsub.s32 4, %v225
        %v227 = vrot.slane %v174, %v226
        %v228 = vmul.f32 %v222, %v227
        %v229 = vadd.f32 %v209, %v228
        %v230 = vadd.f32 %v229, %v219
        %v231 = vmax.f32 %v230, 0.0
        %s232 = scalar_lea.vmem [#allocation5], 8
        %v233 = vld [vmem:[%s232] sm:$0xff]
        %235 = vset.pattern.permute.xlu0 0
        %236 = vperm.xlu0 %235, %v233
        %v237 = vpop.permute.xlu0 %236
        %v239 = vlaneseq
        %v240 = vshrl.u32 %v239, 7
        %v241 = vsub.s32 0, %v240
        %v242 = vrot.slane %v231, %v241
        %v243 = vmul.f32 %v237, %v242
        %244 = vset.pattern.permute.xlu0 8
        %245 = vperm.xlu0 %244, %v233
        %v246 = vpop.permute.xlu0 %245
        %v248 = vadd.f32 %v246, %v243
        %249 = vset.pattern.permute.xlu0 1
        %250 = vperm.xlu0 %249, %v233
        %v251 = vpop.permute.xlu0 %250
        %v253 = vlaneseq
        %v254 = vshrl.u32 %v253, 7
        %v255 = vsub.s32 1, %v254
        %v256 = vrot.slane %v231, %v255
        %v257 = vmul.f32 %v251, %v256
        %258 = vset.pattern.permute.xlu0 2
        %259 = vperm.xlu0 %258, %v233
        %v260 = vpop.permute.xlu0 %259
        %v262 = vlaneseq
        %v263 = vshrl.u32 %v262, 7
        %v264 = vsub.s32 2, %v263
        %v265 = vrot.slane %v231, %v264
        %v266 = vmul.f32 %v260, %v265
        %v267 = vadd.f32 %v248, %v266
        %268 = vset.pattern.permute.xlu0 3
        %269 = vperm.xlu0 %268, %v233
        %v270 = vpop.permute.xlu0 %269
        %v272 = vlaneseq
        %v273 = vshrl.u32 %v272, 7
        %v274 = vsub.s32 3, %v273
        %v275 = vrot.slane %v231, %v274
        %v276 = vmul.f32 %v270, %v275
        %v277 = vadd.f32 %v257, %v276
        %278 = vset.pattern.permute.xlu0 4
        %279 = vperm.xlu0 %278, %v233
        %v280 = vpop.permute.xlu0 %279
        %v282 = vlaneseq
        %v283 = vshrl.u32 %v282, 7
        %v284 = vsub.s32 4, %v283
        %v285 = vrot.slane %v231, %v284
        %v286 = vmul.f32 %v280, %v285
        %v287 = vadd.f32 %v267, %v286
        %288 = vset.pattern.permute.xlu0 5
        %289 = vperm.xlu0 %288, %v233
        %v290 = vpop.permute.xlu0 %289
        %v292 = vlaneseq
        %v293 = vshrl.u32 %v292, 7
        %v294 = vsub.s32 5, %v293
        %v295 = vrot.slane %v231, %v294
        %v296 = vmul.f32 %v290, %v295
        %v297 = vadd.f32 %v277, %v296
        %298 = vset.pattern.permute.xlu0 6
        %299 = vperm.xlu0 %298, %v233
        %v300 = vpop.permute.xlu0 %299
        %v302 = vlaneseq
        %v303 = vshrl.u32 %v302, 7
        %v304 = vsub.s32 6, %v303
        %v305 = vrot.slane %v231, %v304
        %v306 = vmul.f32 %v300, %v305
        %v307 = vadd.f32 %v287, %v306
        %308 = vset.pattern.permute.xlu0 7
        %309 = vperm.xlu0 %308, %v233
        %v310 = vpop.permute.xlu0 %309
        %v312 = vlaneseq
        %v313 = vshrl.u32 %v312, 7
        %v314 = vsub.s32 7, %v313
        %v315 = vrot.slane %v231, %v314
        %v316 = vmul.f32 %v310, %v315
        %v317 = vadd.f32 %v297, %v316
        %v318 = vadd.f32 %v307, %v317
        %v319 = vmax.f32 %v318, 0.0
        %s320 = scalar_lea.vmem [#allocation5], 16
        %v321 = vld [vmem:[%s320] sm:$0xff]
        %323 = vset.pattern.permute.xlu0 0
        %324 = vperm.xlu0 %323, %v321
        %v325 = vpop.permute.xlu0 %324
        %v327 = vlaneseq
        %v328 = vshrl.u32 %v327, 7
        %v329 = vsub.s32 0, %v328
        %v330 = vrot.slane %v319, %v329
        %v331 = vmul.f32 %v325, %v330
        %332 = vset.pattern.permute.xlu0 8
        %333 = vperm.xlu0 %332, %v321
        %v334 = vpop.permute.xlu0 %333
        %v336 = vadd.f32 %v334, %v331
        %337 = vset.pattern.permute.xlu0 1
        %338 = vperm.xlu0 %337, %v321
        %v339 = vpop.permute.xlu0 %338
        %v341 = vlaneseq
        %v342 = vshrl.u32 %v341, 7
        %v343 = vsub.s32 1, %v342
        %v344 = vrot.slane %v319, %v343
        %v345 = vmul.f32 %v339, %v344
        %346 = vset.pattern.permute.xlu0 2
        %347 = vperm.xlu0 %346, %v321
        %v348 = vpop.permute.xlu0 %347
        %v350 = vlaneseq
        %v351 = vshrl.u32 %v350, 7
        %v352 = vsub.s32 2, %v351
        %v353 = vrot.slane %v319, %v352
        %v354 = vmul.f32 %v348, %v353
        %v355 = vadd.f32 %v336, %v354
        %356 = vset.pattern.permute.xlu0 3
        %357 = vperm.xlu0 %356, %v321
        %v358 = vpop.permute.xlu0 %357
        %v360 = vlaneseq
        %v361 = vshrl.u32 %v360, 7
        %v362 = vsub.s32 3, %v361
        %v363 = vrot.slane %v319, %v362
        %v364 = vmul.f32 %v358, %v363
        %v365 = vadd.f32 %v345, %v364
        %366 = vset.pattern.permute.xlu0 4
        %367 = vperm.xlu0 %366, %v321
        %v368 = vpop.permute.xlu0 %367
        %v370 = vlaneseq
        %v371 = vshrl.u32 %v370, 7
        %v372 = vsub.s32 4, %v371
        %v373 = vrot.slane %v319, %v372
        %v374 = vmul.f32 %v368, %v373
        %v375 = vadd.f32 %v355, %v374
        %376 = vset.pattern.permute.xlu0 5
        %377 = vperm.xlu0 %376, %v321
        %v378 = vpop.permute.xlu0 %377
        %v380 = vlaneseq
        %v381 = vshrl.u32 %v380, 7
        %v382 = vsub.s32 5, %v381
        %v383 = vrot.slane %v319, %v382
        %v384 = vmul.f32 %v378, %v383
        %v385 = vadd.f32 %v365, %v384
        %386 = vset.pattern.permute.xlu0 6
        %387 = vperm.xlu0 %386, %v321
        %v388 = vpop.permute.xlu0 %387
        %v390 = vlaneseq
        %v391 = vshrl.u32 %v390, 7
        %v392 = vsub.s32 6, %v391
        %v393 = vrot.slane %v319, %v392
        %v394 = vmul.f32 %v388, %v393
        %v395 = vadd.f32 %v375, %v394
        %396 = vset.pattern.permute.xlu0 7
        %397 = vperm.xlu0 %396, %v321
        %v398 = vpop.permute.xlu0 %397
        %v400 = vlaneseq
        %v401 = vshrl.u32 %v400, 7
        %v402 = vsub.s32 7, %v401
        %v403 = vrot.slane %v319, %v402
        %v404 = vmul.f32 %v398, %v403
        %v405 = vadd.f32 %v385, %v404
        %v406 = vadd.f32 %v395, %v405
        %407 = vst [vmem:[%s173] sm:$0x3] %v406
        %s408 = sand.u32 %s75, 1
        %s409 = scalar_lea.sflag [#allocation4], %s408
        %s410 = sand.u32 %s75, 1
        %s411 = smul.addr %s410, 2
        %s412 = scalar_lea.vmem [#allocation7], %s411
        // Predicated region
        $region37: #{tpu_custom_call.1} parent=27 // pred_check
          %p413 = pneg %p85
        $region38: #{tpu_custom_call.1} parent=27 // pred_check_branch
          %415 = sbr.rel (%p413) target = $region40
        $region39: #{tpu_custom_call.1} parent=27 // pred_region
          %s417 = ssub.s32 32, 32
          %418 = vsyncadd %s409, %s417
          %s419 = smul.addr %s20, 32
          %s420 = scalar_lea.hbm %s2, %s419
          %s422 = sshll.u32 %s412, 4
          %s423 = int_to_ptr.vmem [resolvable:$true] %s422
          %425 = dma.vmem_to_hbm [thread:$0]  %s423, 32, %s420, %s409
        $region40: #{tpu_custom_call.1} parent=27 // pred_fallthru
          _
      $region28: #{tpu_custom_call.1} parent=5 // pred_fallthru
        _
      %p426 = scmp.le.s32.totalorder 2, %s15
      // Predicated region
      $region41: #{tpu_custom_call.1} parent=5 // pred_check
        %p427 = pneg %p426
      $region42: #{tpu_custom_call.1} parent=5 // pred_check_branch
        %429 = sbr.rel (%p427) target = $region44
      $region43: #{tpu_custom_call.1} parent=5 // pred_region
        %s430 = ssub.s32 %s15, 2
        // Predicated region
        $region45: #{tpu_custom_call.1} parent=43 // pred_check
          %p431 = pneg %p91
        $region46: #{tpu_custom_call.1} parent=43 // pred_check_branch
          %433 = sbr.rel (%p431) target = $region48
        $region47: #{tpu_custom_call.1} parent=43 // pred_region
          %s434 = sand.u32 %s76, 1
          %s435 = scalar_lea.sflag [#allocation4], %s434
          %s436 = sand.u32 %s76, 1
          %s437 = smul.addr %s436, 2
          %s438 = scalar_lea.vmem [#allocation7], %s437
          %439 = dma.done %s435, 32
        $region48: #{tpu_custom_call.1} parent=43 // pred_fallthru
          _
      $region44: #{tpu_custom_call.1} parent=5 // pred_fallthru
        _
    $region6: #{tpu_custom_call.1} parent=1 // loop_footer
      %s19 = sadd.s32 1, %s15
    $region7: #{tpu_custom_call.1} parent=1 // loop_footer_branch
      %14 = sbr.rel target = $region3
    $region8: #{tpu_custom_call.1} parent=1 // loop_exit
      _
    %440 = vsyncpa [#allocation3], 1
    %s441 = scalar_lea.sflag [#allocation3], 1
    %442 = vsyncpa %s441, 1
    %443 = vsyncpa [#allocation6], 1
    %444 = vsyncpa [#allocation4], 1
    %s445 = scalar_lea.sflag [#allocation4], 1
    %446 = vsyncpa %s445, 1

</llo_original>
